<compile_context>
chip_gen: v7x
topology: tpu7x:2x2x1
jax: 0.10.0
libtpu: 0.0.40
codegen_flags: <defaults>
</compile_context>

<pallas_src>
import functools

import jax
import jax.numpy as jnp
from jax.experimental import pallas as pl
from jax.experimental.pallas import tpu as pltpu

LOG_STD_MIN = -20.0
LOG_STD_MAX = 2.0
HEAD_PAD = 128          # lane-dense fused head width: [mu | log_std | zeros]


def _contnet_kernel(obs_ref, w1_ref, b1_ref, w2_ref, b2_ref, wh_ref, bh_ref,
                    out_ref, *, action_size):
    """fc1 -> relu -> fc2 -> relu -> fused (mu | clamp(log_std)) head."""
    cdt = w1_ref.dtype                                      # compute dtype (f32 or bf16)
    x = obs_ref[...]                                        # (TB, S)

    # fc1 + ReLU (bias/ReLU in f32, then cast back to compute dtype for the MXU)
    h1 = jnp.dot(x, w1_ref[...], preferred_element_type=jnp.float32)
    h1 = jnp.maximum(h1 + b1_ref[...], 0.0).astype(cdt)     # (TB, H)

    # fc2 + ReLU
    h2 = jnp.dot(h1, w2_ref[...], preferred_element_type=jnp.float32)
    h2 = jnp.maximum(h2 + b2_ref[...], 0.0).astype(cdt)     # (TB, H)

    # Single fused head matmul into a lane-dense (TB, 128) slab.
    y = jnp.dot(h2, wh_ref[...], preferred_element_type=jnp.float32)
    y = y + bh_ref[...]                                     # (TB, 128), f32

    # Clamp only the log_std lanes [A, 2A); mu lanes pass through untouched.
    lane = jax.lax.broadcasted_iota(jnp.int32, y.shape, 1)
    is_log_std = (lane >= action_size) & (lane < 2 * action_size)
    y = jnp.where(is_log_std, jnp.clip(y, LOG_STD_MIN, LOG_STD_MAX), y)

    out_ref[...] = y.astype(out_ref.dtype)


def contnet_forward(obs, params, *, compute_dtype=jnp.float32, block_b=512):
    """obs: (B, state_size) f32; params: dict of transposed weights / 2-D biases.

    Returns (mu, log_std), each (B, action_size) float32.
    """
    B, S = obs.shape
    H = params["w1"].shape[1]
    A = params["wmu"].shape[1]
    assert 2 * A <= HEAD_PAD

    # --- Fuse + lane-pad the two heads: one (H, 128) weight, one (1, 128) bias.
    wh = jnp.zeros((H, HEAD_PAD), jnp.float32)
    wh = wh.at[:, :A].set(params["wmu"]).at[:, A:2 * A].set(params["wls"])
    bh = jnp.zeros((1, HEAD_PAD), jnp.float32)
    bh = bh.at[:, :A].set(params["bmu"]).at[:, A:2 * A].set(params["bls"])

    cdt = jnp.dtype(compute_dtype)
    obs_c = obs.astype(cdt)
    w1 = params["w1"].astype(cdt)
    w2 = params["w2"].astype(cdt)
    wh = wh.astype(cdt)
    b1 = params["b1"].astype(jnp.float32)   # epilogue stays f32 (v5e: no bf16 VPU)
    b2 = params["b2"].astype(jnp.float32)
    bh = bh.astype(jnp.float32)

    kernel = functools.partial(_contnet_kernel, action_size=A)

    weight_args = (w1, b1, w2, b2, wh, bh)
    flops = 2 * B * (S * H + H * H + H * HEAD_PAD)
    bytes_acc = (obs_c.size * obs_c.dtype.itemsize
                 + sum(a.size * a.dtype.itemsize for a in weight_args)
                 + B * HEAD_PAD * 4)
    ce = pl.CostEstimate(flops=flops, transcendentals=0, bytes_accessed=bytes_acc)

    if B <= block_b:
        # Tiny batch: grid-free call -- all operands live whole in VMEM; no
        # per-step pipelining bookkeeping for a degenerate grid.
        vmem = pl.BlockSpec(memory_space=pltpu.MemorySpace.VMEM)
        y = pl.pallas_call(
            kernel,
            out_shape=jax.ShapeDtypeStruct((B, HEAD_PAD), jnp.float32),
            in_specs=[vmem] * (1 + len(weight_args)),
            out_specs=vmem,
            cost_estimate=ce,
        )(obs_c, *weight_args)
    else:
        # Realistic RL batch: tile over B. Weights/biases use full-extent blocks
        # with a constant index_map so they stay VMEM-resident across steps;
        # obs/out are blocked on B and pipelined. The B axis is "parallel"
        # (on v7x the two TensorCores each take half the grid; TB kept modest
        # so activations fit v7x's smaller VMEM).
        tb = block_b
        nb = pl.cdiv(B, tb)
        pad = nb * tb - B
        obs_p = jnp.pad(obs_c, ((0, pad), (0, 0))) if pad else obs_c

        def full(a):
            return pl.BlockSpec(a.shape, lambda i, _nd=a.ndim: (0,) * _nd)

        y = pl.pallas_call(
            kernel,
            out_shape=jax.ShapeDtypeStruct((nb * tb, HEAD_PAD), jnp.float32),
            grid=(nb,),
            in_specs=[pl.BlockSpec((tb, S), lambda i: (i, 0))]
                     + [full(a) for a in weight_args],
            out_specs=pl.BlockSpec((tb, HEAD_PAD), lambda i: (i, 0)),
            compiler_params=pltpu.CompilerParams(
                dimension_semantics=("parallel",)),
            cost_estimate=ce,
        )(obs_p, *weight_args)
        y = y[:B]

    mu = y[:, :A]
    log_std = y[:, A:2 * A]
    return mu, log_std


def init_params(key, state_size=11, action_size=2, hidden_size=32, init_w=0.003):
    """Deterministic init mirroring the PyTorch module's layer shapes.

    PyTorch stores Linear weights as (out, in); we store the transpose (in, out)
    so the kernel does x @ W. Hidden layers use U(-1/sqrt(fan_in), 1/sqrt(fan_in));
    head weights use U(-init_w, init_w); biases use the nn.Linear default bound.
    """
    ks = jax.random.split(key, 8)

    def uni(k, shape, bound):
        return jax.random.uniform(k, shape, jnp.float32, -bound, bound)

    b1v = 1.0 / jnp.sqrt(state_size)
    b2v = 1.0 / jnp.sqrt(hidden_size)
    return {
        "w1":  uni(ks[0], (state_size, hidden_size), b1v),
        "b1":  uni(ks[1], (1, hidden_size), b1v),
        "w2":  uni(ks[2], (hidden_size, hidden_size), b2v),
        "b2":  uni(ks[3], (1, hidden_size), b2v),
        "wmu": uni(ks[4], (hidden_size, action_size), init_w),
        "bmu": uni(ks[5], (1, action_size), b2v),
        "wls": uni(ks[6], (hidden_size, action_size), init_w),
        "bls": uni(ks[7], (1, action_size), b2v),
    }


def contnet_ref(obs, p):
    """Pure-JAX reference for correctness checking."""
    h1 = jnp.maximum(obs @ p["w1"] + p["b1"], 0.0)
    h2 = jnp.maximum(h1 @ p["w2"] + p["b2"], 0.0)
    mu = h2 @ p["wmu"] + p["bmu"]
    log_std = jnp.clip(h2 @ p["wls"] + p["bls"], LOG_STD_MIN, LOG_STD_MAX)
    return mu, log_std


if __name__ == "__main__":
    key = jax.random.PRNGKey(0)
    k_obs, k_par, k_big = jax.random.split(key, 3)

    B, STATE, ACTION, HIDDEN = 8, 11, 2, 32
    obs = jax.random.normal(k_obs, (B, STATE), jnp.float32)
    params = init_params(k_par, STATE, ACTION, HIDDEN)

    fwd = jax.jit(contnet_forward, static_argnames=("compute_dtype", "block_b"))

    # 1) Small batch -> grid-free, whole-in-VMEM path (f32).
    mu, log_std = fwd(obs, params)
    jax.block_until_ready((mu, log_std))
    mu_ref, ls_ref = contnet_ref(obs, params)
    assert mu.shape == (B, ACTION) and log_std.shape == (B, ACTION)
    assert jnp.allclose(mu, mu_ref, atol=1e-5, rtol=1e-5)
    assert jnp.allclose(log_std, ls_ref, atol=1e-5, rtol=1e-5)

    # 2) Larger batch -> batch-tiled path (VMEM-resident weights, "parallel" B).
    BIG = 300
    obs_big = jax.random.normal(k_big, (BIG, STATE), jnp.float32)
    mu_b, ls_b = fwd(obs_big, params, block_b=128)
    jax.block_until_ready((mu_b, ls_b))
    mu_br, ls_br = contnet_ref(obs_big, params)
    assert mu_b.shape == (BIG, ACTION) and ls_b.shape == (BIG, ACTION)
    assert jnp.allclose(mu_b, mu_br, atol=1e-5, rtol=1e-5)
    assert jnp.allclose(ls_b, ls_br, atol=1e-5, rtol=1e-5)

    # 3) bf16 weights/activations (v6e/v7x fast path), f32 accumulate + epilogue.
    mu_h, ls_h = fwd(obs, params, compute_dtype=jnp.bfloat16)
    jax.block_until_ready((mu_h, ls_h))
    assert jnp.allclose(mu_h, mu_ref, atol=5e-2, rtol=5e-2)
    assert jnp.allclose(ls_h, ls_ref, atol=5e-2, rtol=5e-2)

    print("KERNEL_OK")
</pallas_src>

<mosaic_0001>
module attributes {stable_mosaic.version = 11 : i64} {
  func.func @_contnet_kernel(%arg0: memref<8x11xf32, #tpu.memory_space<vmem>>, %arg1: memref<11x32xf32, #tpu.memory_space<vmem>>, %arg2: memref<1x32xf32, #tpu.memory_space<vmem>>, %arg3: memref<32x32xf32, #tpu.memory_space<vmem>>, %arg4: memref<1x32xf32, #tpu.memory_space<vmem>>, %arg5: memref<32x128xf32, #tpu.memory_space<vmem>>, %arg6: memref<1x128xf32, #tpu.memory_space<vmem>>, %arg7: memref<8x128xf32, #tpu.memory_space<vmem>>) attributes {dimension_semantics = [], scalar_prefetch = 0 : i64, scratch_operands = 0 : i64, tpu.core_type = #tpu.core_type<tc>} {
    %c0 = arith.constant 0 : index
    %c0_0 = arith.constant 0 : index
    %0 = vector.load %arg0[%c0, %c0_0] : memref<8x11xf32, #tpu.memory_space<vmem>>, vector<8x11xf32>
    %c0_1 = arith.constant 0 : index
    %c0_2 = arith.constant 0 : index
    %1 = vector.load %arg1[%c0_1, %c0_2] : memref<11x32xf32, #tpu.memory_space<vmem>>, vector<11x32xf32>
    %cst = arith.constant dense<0.000000e+00> : vector<8x32xf32>
    %2 = tpu.matmul %0, %1, %cst {dimension_numbers = #tpu.dot_dimension_numbers<[1], [0], [0], [1], [0, 0, 1, 1], [], []>} : vector<8x11xf32>, vector<11x32xf32>, vector<8x32xf32> -> vector<8x32xf32>
    %c0_3 = arith.constant 0 : index
    %c0_4 = arith.constant 0 : index
    %3 = vector.load %arg2[%c0_3, %c0_4] : memref<1x32xf32, #tpu.memory_space<vmem>>, vector<1x32xf32>
    %4 = vector.broadcast %3 : vector<1x32xf32> to vector<8x32xf32>
    %5 = arith.addf %2, %4 : vector<8x32xf32>
    %cst_5 = arith.constant 0.000000e+00 : f32
    %6 = vector.broadcast %cst_5 : f32 to vector<8x32xf32>
    %7 = arith.maximumf %5, %6 : vector<8x32xf32>
    %c0_6 = arith.constant 0 : index
    %c0_7 = arith.constant 0 : index
    %8 = vector.load %arg3[%c0_6, %c0_7] : memref<32x32xf32, #tpu.memory_space<vmem>>, vector<32x32xf32>
    %cst_8 = arith.constant dense<0.000000e+00> : vector<8x32xf32>
    %9 = tpu.matmul %7, %8, %cst_8 {dimension_numbers = #tpu.dot_dimension_numbers<[1], [0], [0], [1], [0, 0, 1, 1], [], []>} : vector<8x32xf32>, vector<32x32xf32>, vector<8x32xf32> -> vector<8x32xf32>
    %c0_9 = arith.constant 0 : index
    %c0_10 = arith.constant 0 : index
    %10 = vector.load %arg4[%c0_9, %c0_10] : memref<1x32xf32, #tpu.memory_space<vmem>>, vector<1x32xf32>
    %11 = vector.broadcast %10 : vector<1x32xf32> to vector<8x32xf32>
    %12 = arith.addf %9, %11 : vector<8x32xf32>
    %cst_11 = arith.constant 0.000000e+00 : f32
    %13 = vector.broadcast %cst_11 : f32 to vector<8x32xf32>
    %14 = arith.maximumf %12, %13 : vector<8x32xf32>
    %c0_12 = arith.constant 0 : index
    %c0_13 = arith.constant 0 : index
    %15 = vector.load %arg5[%c0_12, %c0_13] : memref<32x128xf32, #tpu.memory_space<vmem>>, vector<32x128xf32>
    %cst_14 = arith.constant dense<0.000000e+00> : vector<8x128xf32>
    %16 = tpu.matmul %14, %15, %cst_14 {dimension_numbers = #tpu.dot_dimension_numbers<[1], [0], [0], [1], [0, 0, 1, 1], [], []>} : vector<8x32xf32>, vector<32x128xf32>, vector<8x128xf32> -> vector<8x128xf32>
    %c0_15 = arith.constant 0 : index
    %c0_16 = arith.constant 0 : index
    %17 = vector.load %arg6[%c0_15, %c0_16] : memref<1x128xf32, #tpu.memory_space<vmem>>, vector<1x128xf32>
    %18 = vector.broadcast %17 : vector<1x128xf32> to vector<8x128xf32>
    %19 = arith.addf %16, %18 : vector<8x128xf32>
    %20 = tpu.iota {dimensions = array<i32: 1>} : vector<8x128xi32>
    %c2_i32 = arith.constant 2 : i32
    %21 = vector.broadcast %c2_i32 : i32 to vector<8x128xi32>
    %22 = arith.cmpi sge, %20, %21 : vector<8x128xi32>
    %c4_i32 = arith.constant 4 : i32
    %23 = vector.broadcast %c4_i32 : i32 to vector<8x128xi32>
    %24 = arith.cmpi slt, %20, %23 : vector<8x128xi32>
    %25 = arith.andi %22, %24 : vector<8x128xi1>
    %cst_17 = arith.constant -2.000000e+01 : f32
    %cst_18 = arith.constant 2.000000e+00 : f32
    %26 = vector.broadcast %cst_17 : f32 to vector<8x128xf32>
    %27 = arith.maximumf %26, %19 : vector<8x128xf32>
    %28 = vector.broadcast %cst_18 : f32 to vector<8x128xf32>
    %29 = arith.minimumf %28, %27 : vector<8x128xf32>
    %30 = arith.select %25, %29, %19 : vector<8x128xi1>, vector<8x128xf32>
    %c0_19 = arith.constant 0 : index
    %c0_20 = arith.constant 0 : index
    %31 = vector.load %arg7[%c0_19, %c0_20] : memref<8x128xf32, #tpu.memory_space<vmem>>, vector<8x128xf32>
    tpu.vector_store %arg7[%c0_19, %c0_20], %30 {strides = array<i32>} : memref<8x128xf32, #tpu.memory_space<vmem>>, vector<8x128xf32>,
    return
  }
}

</mosaic_0001>

<llo_original>
// kernel: contnet_forward.1
$region0: #{contnet_forward.1}
  #allocation0 [shape = 'u32[]', space=smem, size = 0x4, offset = 0x4, fixed_abs, tag = 'smem constant byte address 0x4 - core index']
  #allocation1 [shape = 'u32[144,128]{1,0:T(1,128)}', space=vmem, size = 0x12000, scoped, tag = 'internal scratch']
  %s0 = inlined_call_operand.vmem [shape: f32[8,11], index: 0, kind: input, shape index: {}]
  %s1 = inlined_call_operand.vmem [shape: f32[11,32], index: 1, kind: input, shape index: {}]
  %s2 = inlined_call_operand.vmem [shape: f32[1,32], index: 2, kind: input, shape index: {}]
  %s3 = inlined_call_operand.vmem [shape: f32[32,32], index: 3, kind: input, shape index: {}]
  %s4 = inlined_call_operand.vmem [shape: f32[1,32], index: 4, kind: input, shape index: {}]
  %s5 = inlined_call_operand.vmem [shape: f32[32,128], index: 5, kind: input, shape index: {}]
  %s6 = inlined_call_operand.vmem [shape: f32[1,128], index: 6, kind: input, shape index: {}]
  %s7 = inlined_call_operand.vmem [shape: f32[8,128], index: 7, kind: output, shape index: {}]
  %s8 = sld [smem:[#allocation0]]
  $region38: #{contnet_forward.1} parent=0
    _
  %s10 = ssub.s32 1, %s8
  %s11 = scalar_select 0, %s10, %s8
  // Predicated region
  $region2: #{contnet_forward.1} parent=0 // pred_check
    _
  $region3: #{contnet_forward.1} parent=0 // pred_check_branch
    %13 = sbr.rel (0) target = $region5
  $region4: #{contnet_forward.1} parent=0 // pred_region
    _
  $region5: #{contnet_forward.1} parent=0 // pred_fallthru
    _
  // Predicated region
  $region6: #{contnet_forward.1} parent=0 // pred_check
    _
  $region7: #{contnet_forward.1} parent=0 // pred_check_branch
    %15 = sbr.rel (0) target = $region9
  $region8: #{contnet_forward.1} parent=0 // pred_region
    _
  $region9: #{contnet_forward.1} parent=0 // pred_fallthru
    _
  // Predicated region
  $region10: #{contnet_forward.1} parent=0 // pred_check
    _
  $region11: #{contnet_forward.1} parent=0 // pred_check_branch
    %17 = sbr.rel (0) target = $region13
  $region12: #{contnet_forward.1} parent=0 // pred_region
    _
  $region13: #{contnet_forward.1} parent=0 // pred_fallthru
    _
  // Predicated region
  $region14: #{contnet_forward.1} parent=0 // pred_check
    _
  $region15: #{contnet_forward.1} parent=0 // pred_check_branch
    %19 = sbr.rel (0) target = $region17
  $region16: #{contnet_forward.1} parent=0 // pred_region
    _
  $region17: #{contnet_forward.1} parent=0 // pred_fallthru
    _
  // Predicated region
  $region18: #{contnet_forward.1} parent=0 // pred_check
    _
  $region19: #{contnet_forward.1} parent=0 // pred_check_branch
    %21 = sbr.rel (0) target = $region21
  $region20: #{contnet_forward.1} parent=0 // pred_region
    _
  $region21: #{contnet_forward.1} parent=0 // pred_fallthru
    _
  // Predicated region
  $region22: #{contnet_forward.1} parent=0 // pred_check
    _
  $region23: #{contnet_forward.1} parent=0 // pred_check_branch
    %23 = sbr.rel (0) target = $region25
  $region24: #{contnet_forward.1} parent=0 // pred_region
    _
  $region25: #{contnet_forward.1} parent=0 // pred_fallthru
    _
  // Predicated region
  $region26: #{contnet_forward.1} parent=0 // pred_check
    _
  $region27: #{contnet_forward.1} parent=0 // pred_check_branch
    %25 = sbr.rel (0) target = $region29
  $region28: #{contnet_forward.1} parent=0 // pred_region
    _
  $region29: #{contnet_forward.1} parent=0 // pred_fallthru
    _
  %v26 = vld [vmem:[%s0] sm:$0xff]
  %v27 = vld [vmem:[%s1] sm:$0xff]
  %v28 = vld [vmem:[%s1 + $0x8] sm:$0x7]
  %v29 = vld [vmem:[%s2] sm:$0x1]
  %v31 = vlaneseq
  %v32 = vshrl.u32 %v31, 7
  %v33 = vsub.s32 0, %v32
  %v34 = vrot.slane %v29, %v33
  %vm36 = vcmask 89088
  %v38 = vsel %vm36, %v26, 0
  %vm40 = vcmask 1042432
  %v42 = vsel %vm40, %v28, 0
  %44 = vmatprep.subr.mxu0 0.0
  %45 = vmatpush1.msra.mxu0 %v27
  %46 = vmatprep.subr.mxu0 0.0
  %47 = vmatpush1.msra.mxu0 %v42
  %48 = vmatprep.subr.mxu0 0.0
  %49 = vmatpush1.msra.mxu0 0.0
  %50 = vmatprep.subr.mxu0 0.0
  %51 = vmatpush1.msra.mxu0 0.0
  %52 = vmatprep.subr.mxu0 0.0
  %53 = vmatpush1.msra.mxu0 0.0
  %54 = vmatprep.subr.mxu0 0.0
  %55 = vmatpush1.msra.mxu0 0.0
  %56 = vmatprep.subr.mxu0 0.0
  %57 = vmatpush1.msra.mxu0 0.0
  %58 = vmatprep.subr.mxu0 0.0
  %59 = vmatpush1.msra.mxu0 0.0
  %60 = vmatprep.subr.mxu0 0.0
  %61 = vmatpush1.msra.mxu0 0.0
  %62 = vmatprep.subr.mxu0 0.0
  %63 = vmatpush1.msra.mxu0 0.0
  %64 = vmatprep.subr.mxu0 0.0
  %65 = vmatpush1.msra.mxu0 0.0
  %66 = vmatprep.subr.mxu0 0.0
  %67 = vmatpush1.msra.mxu0 0.0
  %68 = vmatprep.subr.mxu0 0.0
  %69 = vmatpush1.msra.mxu0 0.0
  %70 = vmatprep.subr.mxu0 0.0
  %71 = vmatpush1.msra.mxu0 0.0
  %72 = vmatprep.subr.mxu0 0.0
  %73 = vmatpush1.msra.mxu0 0.0
  %74 = vmatprep.subr.mxu0 0.0
  %75 = vmatpush1.msra.mxu0 0.0
  %76 = vmatprep.subr.mxu0 0.0
  %77 = vmatpush1.msra.mxu0 0.0
  %78 = vmatprep.subr.mxu0 0.0
  %79 = vmatpush1.msra.mxu0 0.0
  %80 = vmatprep.subr.mxu0 0.0
  %81 = vmatpush1.msra.mxu0 0.0
  %82 = vmatprep.subr.mxu0 0.0
  %83 = vmatpush1.msra.mxu0 0.0
  %84 = vmatprep.subr.mxu0 0.0
  %85 = vmatpush1.msra.mxu0 0.0
  %86 = vmatprep.subr.mxu0 0.0
  %87 = vmatpush1.msra.mxu0 0.0
  %88 = vmatprep.subr.mxu0 0.0
  %89 = vmatpush1.msra.mxu0 0.0
  %90 = vmatprep.subr.mxu0 0.0
  %91 = vmatpush1.msra.mxu0 0.0
  %92 = vmatprep.subr.mxu0 0.0
  %93 = vmatpush1.msra.mxu0 0.0
  %94 = vmatprep.subr.mxu0 0.0
  %95 = vmatpush1.msra.mxu0 0.0
  %96 = vmatprep.subr.mxu0 0.0
  %97 = vmatpush1.msra.mxu0 0.0
  %98 = vmatprep.subr.mxu0 0.0
  %99 = vmatpush1.msra.mxu0 0.0
  %100 = vmatprep.subr.mxu0 0.0
  %101 = vmatpush1.msra.mxu0 0.0
  %102 = vmatprep.subr.mxu0 0.0
  %103 = vmatpush1.msra.mxu0 0.0
  %104 = vmatprep.subr.mxu0 0.0
  %105 = vmatpush1.msra.mxu0 0.0
  %106 = vmatprep.subr.mxu0 0.0
  %107 = vmatpush1.msra.mxu0 0.0
  %108 = vmatprep.mubr.f32.mxu0 0.0
  %109 = vmatmul.mubr.f32.gmra.mrb[0].mxu0 %v38
  %v110 = vpop.f32.mrb[0].mxu0
  %v111 = vadd.f32 %v34, %v110
  %v112 = vpop.f32.mrb[0].mxu0
  %113 = vdwg.mxu0
  %v114 = vmax.f32 %v111, 0.0
  %v115 = vld [vmem:[%s3] sm:$0xff]
  %v116 = vld [vmem:[%s3 + $0x8] sm:$0xff]
  %v117 = vld [vmem:[%s3 + $0x10] sm:$0xff]
  %v118 = vld [vmem:[%s3 + $0x18] sm:$0xff]
  %v119 = vld [vmem:[%s4] sm:$0x1]
  %v121 = vlaneseq
  %v122 = vshrl.u32 %v121, 7
  %v123 = vsub.s32 0, %v122
  %v124 = vrot.slane %v119, %v123
  %vm126 = vcmask 261120
  %v128 = vsel %vm126, %v114, 0
  %130 = vmatprep.subr.mxu0 0.0
  %131 = vmatpush1.msra.mxu0 %v115
  %132 = vmatprep.subr.mxu0 0.0
  %133 = vmatpush1.msra.mxu0 %v116
  %134 = vmatprep.subr.mxu0 0.0
  %135 = vmatpush1.msra.mxu0 %v117
  %136 = vmatprep.subr.mxu0 0.0
  %137 = vmatpush1.msra.mxu0 %v118
  %138 = vmatprep.subr.mxu0 0.0
  %139 = vmatpush1.msra.mxu0 0.0
  %140 = vmatprep.subr.mxu0 0.0
  %141 = vmatpush1.msra.mxu0 0.0
  %142 = vmatprep.subr.mxu0 0.0
  %143 = vmatpush1.msra.mxu0 0.0
  %144 = vmatprep.subr.mxu0 0.0
  %145 = vmatpush1.msra.mxu0 0.0
  %146 = vmatprep.subr.mxu0 0.0
  %147 = vmatpush1.msra.mxu0 0.0
  %148 = vmatprep.subr.mxu0 0.0
  %149 = vmatpush1.msra.mxu0 0.0
  %150 = vmatprep.subr.mxu0 0.0
  %151 = vmatpush1.msra.mxu0 0.0
  %152 = vmatprep.subr.mxu0 0.0
  %153 = vmatpush1.msra.mxu0 0.0
  %154 = vmatprep.subr.mxu0 0.0
  %155 = vmatpush1.msra.mxu0 0.0
  %156 = vmatprep.subr.mxu0 0.0
  %157 = vmatpush1.msra.mxu0 0.0
  %158 = vmatprep.subr.mxu0 0.0
  %159 = vmatpush1.msra.mxu0 0.0
  %160 = vmatprep.subr.mxu0 0.0
  %161 = vmatpush1.msra.mxu0 0.0
  %162 = vmatprep.subr.mxu0 0.0
  %163 = vmatpush1.msra.mxu0 0.0
  %164 = vmatprep.subr.mxu0 0.0
  %165 = vmatpush1.msra.mxu0 0.0
  %166 = vmatprep.subr.mxu0 0.0
  %167 = vmatpush1.msra.mxu0 0.0
  %168 = vmatprep.subr.mxu0 0.0
  %169 = vmatpush1.msra.mxu0 0.0
  %170 = vmatprep.subr.mxu0 0.0
  %171 = vmatpush1.msra.mxu0 0.0
  %172 = vmatprep.subr.mxu0 0.0
  %173 = vmatpush1.msra.mxu0 0.0
  %174 = vmatprep.subr.mxu0 0.0
  %175 = vmatpush1.msra.mxu0 0.0
  %176 = vmatprep.subr.mxu0 0.0
  %177 = vmatpush1.msra.mxu0 0.0
  %178 = vmatprep.subr.mxu0 0.0
  %179 = vmatpush1.msra.mxu0 0.0
  %180 = vmatprep.subr.mxu0 0.0
  %181 = vmatpush1.msra.mxu0 0.0
  %182 = vmatprep.subr.mxu0 0.0
  %183 = vmatpush1.msra.mxu0 0.0
  %184 = vmatprep.subr.mxu0 0.0
  %185 = vmatpush1.msra.mxu0 0.0
  %186 = vmatprep.subr.mxu0 0.0
  %187 = vmatpush1.msra.mxu0 0.0
  %188 = vmatprep.subr.mxu0 0.0
  %189 = vmatpush1.msra.mxu0 0.0
  %190 = vmatprep.subr.mxu0 0.0
  %191 = vmatpush1.msra.mxu0 0.0
  %192 = vmatprep.subr.mxu0 0.0
  %193 = vmatpush1.msra.mxu0 0.0
  %194 = vmatprep.mubr.f32.mxu0 0.0
  %195 = vmatmul.mubr.f32.gmra.mrb[0].mxu0 %v128
  %v196 = vpop.f32.mrb[0].mxu0
  %v197 = vadd.f32 %v124, %v196
  %v198 = vpop.f32.mrb[0].mxu0
  %199 = vdwg.mxu0
  %v200 = vmax.f32 %v197, 0.0
  %v201 = vld [vmem:[%s5] sm:$0xff]
  %v202 = vld [vmem:[%s5 + $0x8] sm:$0xff]
  %v203 = vld [vmem:[%s5 + $0x10] sm:$0xff]
  %v204 = vld [vmem:[%s5 + $0x18] sm:$0xff]
  %v205 = vld [vmem:[%s6] sm:$0x1]
  %v207 = vlaneseq
  %v208 = vshrl.u32 %v207, 7
  %v209 = vsub.s32 0, %v208
  %v210 = vrot.slane %v205, %v209
  %v213 = vsel %vm126, %v200, 0
  %215 = vmatprep.subr.mxu0 0.0
  %216 = vmatpush1.msra.mxu0 %v201
  %217 = vmatprep.subr.mxu0 0.0
  %218 = vmatpush1.msra.mxu0 %v202
  %219 = vmatprep.subr.mxu0 0.0
  %220 = vmatpush1.msra.mxu0 %v203
  %221 = vmatprep.subr.mxu0 0.0
  %222 = vmatpush1.msra.mxu0 %v204
  %223 = vmatprep.subr.mxu0 0.0
  %224 = vmatpush1.msra.mxu0 0.0
  %225 = vmatprep.subr.mxu0 0.0
  %226 = vmatpush1.msra.mxu0 0.0
  %227 = vmatprep.subr.mxu0 0.0
  %228 = vmatpush1.msra.mxu0 0.0
  %229 = vmatprep.subr.mxu0 0.0
  %230 = vmatpush1.msra.mxu0 0.0
  %231 = vmatprep.subr.mxu0 0.0
  %232 = vmatpush1.msra.mxu0 0.0
  %233 = vmatprep.subr.mxu0 0.0
  %234 = vmatpush1.msra.mxu0 0.0
  %235 = vmatprep.subr.mxu0 0.0
  %236 = vmatpush1.msra.mxu0 0.0
  %237 = vmatprep.subr.mxu0 0.0
  %238 = vmatpush1.msra.mxu0 0.0
  %239 = vmatprep.subr.mxu0 0.0
  %240 = vmatpush1.msra.mxu0 0.0
  %241 = vmatprep.subr.mxu0 0.0
  %242 = vmatpush1.msra.mxu0 0.0
  %243 = vmatprep.subr.mxu0 0.0
  %244 = vmatpush1.msra.mxu0 0.0
  %245 = vmatprep.subr.mxu0 0.0
  %246 = vmatpush1.msra.mxu0 0.0
  %247 = vmatprep.subr.mxu0 0.0
  %248 = vmatpush1.msra.mxu0 0.0
  %249 = vmatprep.subr.mxu0 0.0
  %250 = vmatpush1.msra.mxu0 0.0
  %251 = vmatprep.subr.mxu0 0.0
  %252 = vmatpush1.msra.mxu0 0.0
  %253 = vmatprep.subr.mxu0 0.0
  %254 = vmatpush1.msra.mxu0 0.0
  %255 = vmatprep.subr.mxu0 0.0
  %256 = vmatpush1.msra.mxu0 0.0
  %257 = vmatprep.subr.mxu0 0.0
  %258 = vmatpush1.msra.mxu0 0.0
  %259 = vmatprep.subr.mxu0 0.0
  %260 = vmatpush1.msra.mxu0 0.0
  %261 = vmatprep.subr.mxu0 0.0
  %262 = vmatpush1.msra.mxu0 0.0
  %263 = vmatprep.subr.mxu0 0.0
  %264 = vmatpush1.msra.mxu0 0.0
  %265 = vmatprep.subr.mxu0 0.0
  %266 = vmatpush1.msra.mxu0 0.0
  %267 = vmatprep.subr.mxu0 0.0
  %268 = vmatpush1.msra.mxu0 0.0
  %269 = vmatprep.subr.mxu0 0.0
  %270 = vmatpush1.msra.mxu0 0.0
  %271 = vmatprep.subr.mxu0 0.0
  %272 = vmatpush1.msra.mxu0 0.0
  %273 = vmatprep.subr.mxu0 0.0
  %274 = vmatpush1.msra.mxu0 0.0
  %275 = vmatprep.subr.mxu0 0.0
  %276 = vmatpush1.msra.mxu0 0.0
  %277 = vmatprep.subr.mxu0 0.0
  %278 = vmatpush1.msra.mxu0 0.0
  %279 = vmatprep.mubr.f32.mxu0 0.0
  %280 = vmatmul.mubr.f32.gmra.mrb[0].mxu0 %v213
  %v281 = vpop.f32.mrb[0].mxu0
  %v282 = vadd.f32 %v210, %v281
  %v283 = vpop.f32.mrb[0].mxu0
  %284 = vdwg.mxu0
  %v285 = vlaneseq
  %v286 = vand.u32 %v285, 127
  %vm287 = vcmp.ge.s32.totalorder %v286, 2
  %vm288 = vcmp.lt.s32.totalorder %v286, 4
  %vm289 = vmand %vm287, %vm288
  %v290 = vmax.f32 %v282, -20.0
  %v291 = vmin.f32 %v290, 2.0
  %v292 = vsel %vm289, %v291, %v282
  %293 = vst [vmem:[%s7] sm:$0xff] %v292
  // Predicated region
  $region30: #{contnet_forward.1} parent=0 // pred_check
    _
  $region31: #{contnet_forward.1} parent=0 // pred_check_branch
    %295 = sbr.rel (0) target = $region33
  $region32: #{contnet_forward.1} parent=0 // pred_region
    _
  $region33: #{contnet_forward.1} parent=0 // pred_fallthru
    _
  // Predicated region
  $region34: #{contnet_forward.1} parent=0 // pred_check
    _
  $region35: #{contnet_forward.1} parent=0 // pred_check_branch
    %297 = sbr.rel (0) target = $region37
  $region36: #{contnet_forward.1} parent=0 // pred_region
    _
  $region37: #{contnet_forward.1} parent=0 // pred_fallthru
    _

</llo_original>
